<compile_context>
chip_gen: v7x
topology: tpu7x:2x2x1
jax: 0.10.0
libtpu: 0.0.40
codegen_flags: <defaults>
</compile_context>

<pallas_src>
import functools

import jax
import jax.numpy as jnp
from jax.experimental import pallas as pl
from jax.experimental.pallas import tpu as pltpu

LANE = 128
SUB = 8
_FUSED_VMEM_BUDGET = 28 << 20   # use the single fused kernel below this estimate


def _round_up(x, m):
    return (x + m - 1) // m * m


def _pad2(x, rows, cols):
    return jnp.pad(x, ((0, rows - x.shape[0]), (0, cols - x.shape[1])))


def _vmem_limit(block_bytes):
    # Generous headroom over the actual working set, clamped below v7x's
    # 64 MiB/TC physical VMEM.
    return int(min(max(2 * block_bytes + (4 << 20), 16 << 20), 56 << 20))


# --------------------------------------------------------------------------- #
# Kernels
# --------------------------------------------------------------------------- #
def _gin_fused_kernel(a_ref, x_ref, w1_ref, b1_ref, w2_ref, b2_ref, p_ref,
                      o_ref):
    # Everything resident: both GIN layers + SumPooling in one shot.
    # Padded rows/cols of A and P are zero, so padded node rows of h1/h2 never
    # reach the pooled output -> no explicit row masking needed.
    a = a_ref[...].astype(jnp.float32)           # adjacency is 0/1 -> exact
    x = x_ref[...]
    z1 = x + jnp.dot(a, x, preferred_element_type=jnp.float32)
    h1 = jnp.dot(z1, w1_ref[...], preferred_element_type=jnp.float32) + b1_ref[...]
    h1 = jnp.maximum(h1, 0.0)
    z2 = h1 + jnp.dot(a, h1, preferred_element_type=jnp.float32)
    h2 = jnp.dot(z2, w2_ref[...], preferred_element_type=jnp.float32) + b2_ref[...]
    o_ref[...] = jnp.dot(p_ref[...].astype(jnp.float32), h2,
                         preferred_element_type=jnp.float32)


def _gin_layer1_kernel(a_ref, x_ref, w_ref, b_ref, o_ref, *, n_valid, tile_m):
    # a_ref : (TM, Np)  bf16  dst-row tile of adjacency (dst, src)
    # x_ref : (Np, Din) f32   all node features (resident; src side of A @ X)
    # w_ref : (Din, Dout) f32 ; b_ref: (1, Dout) f32
    i = pl.program_id(0)
    a = a_ref[...].astype(jnp.float32)
    agg = jnp.dot(a, x_ref[...], preferred_element_type=jnp.float32)
    row0 = pl.multiple_of(i * tile_m, tile_m)
    z = x_ref[pl.ds(row0, tile_m), :] + agg      # (1 + eps) * x + sum_{u->v} x_u
    h = jnp.dot(z, w_ref[...], preferred_element_type=jnp.float32) + b_ref[...]
    h = jnp.maximum(h, 0.0)
    # Mask padded dst rows to exact zero so padding never carries the bias.
    row = row0 + jax.lax.broadcasted_iota(jnp.int32, h.shape, 0)
    o_ref[...] = jnp.where(row < n_valid, h, 0.0)


def _gin_layer2_pool_kernel(a_ref, h_ref, w_ref, b_ref, p_ref, o_ref, *,
                            tile_m):
    # Layer-2 GINConv fused with SumPooling; grid axis 0 is a reduction over
    # dst-row tiles and o_ref is a resident (Gp, C) accumulator.  h2 for the
    # tile stays in VMEM/registers and never round-trips through HBM.
    i = pl.program_id(0)
    a = a_ref[...].astype(jnp.float32)
    agg = jnp.dot(a, h_ref[...], preferred_element_type=jnp.float32)
    row0 = pl.multiple_of(i * tile_m, tile_m)
    z = h_ref[pl.ds(row0, tile_m), :] + agg
    h2 = jnp.dot(z, w_ref[...], preferred_element_type=jnp.float32) + b_ref[...]

    @pl.when(i == 0)
    def _():
        o_ref[...] = jnp.zeros_like(o_ref)

    # P's padded columns are zero -> padded h2 rows contribute nothing.
    o_ref[...] += jnp.dot(p_ref[...].astype(jnp.float32), h2,
                          preferred_element_type=jnp.float32)


# --------------------------------------------------------------------------- #
# pallas_call wrappers
# --------------------------------------------------------------------------- #
def _gin_fused(a_p, x_p, w1_p, b1_p, w2_p, b2_p, p_p, *, working_bytes):
    np_, dp = x_p.shape
    cp = w1_p.shape[1]
    gp = p_p.shape[0]
    flops = (2 * np_ * np_ * dp + 2 * np_ * dp * cp
             + 2 * np_ * np_ * cp + 2 * np_ * cp * cp + 2 * gp * np_ * cp)
    bytes_accessed = (np_ * np_ * a_p.dtype.itemsize + np_ * dp * 4
                      + dp * cp * 4 + cp * cp * 4 + 2 * cp * 4
                      + gp * np_ * p_p.dtype.itemsize + gp * cp * 4)
    return pl.pallas_call(
        _gin_fused_kernel,
        out_shape=jax.ShapeDtypeStruct((gp, cp), jnp.float32),
        grid=(1,),
        in_specs=[
            pl.BlockSpec((np_, np_), lambda i: (0, 0)),   # A (bf16, resident)
            pl.BlockSpec((np_, dp), lambda i: (0, 0)),    # X
            pl.BlockSpec((dp, cp), lambda i: (0, 0)),     # W1
            pl.BlockSpec((1, cp), lambda i: (0, 0)),      # b1
            pl.BlockSpec((cp, cp), lambda i: (0, 0)),     # W2
            pl.BlockSpec((1, cp), lambda i: (0, 0)),      # b2
            pl.BlockSpec((gp, np_), lambda i: (0, 0)),    # P (bf16)
        ],
        out_specs=pl.BlockSpec((gp, cp), lambda i: (0, 0)),
        compiler_params=pltpu.CompilerParams(
            dimension_semantics=("arbitrary",),
            vmem_limit_bytes=_vmem_limit(working_bytes)),
        cost_estimate=pl.CostEstimate(flops=flops, transcendentals=0,
                                      bytes_accessed=bytes_accessed),
    )(a_p, x_p, w1_p, b1_p, w2_p, b2_p, p_p)


def _gin_layer1(a_p, x_p, w_p, b_p, *, n_valid, tile_m):
    np_, din = x_p.shape
    dout = w_p.shape[1]
    grid = (np_ // tile_m,)

    block_bytes = (tile_m * np_ * a_p.dtype.itemsize   # A tile (bf16)
                   + tile_m * np_ * 4                  # f32 copy of A tile
                   + np_ * din * 4                     # X resident
                   + din * dout * 4 + dout * 4         # W, b
                   + tile_m * dout * 4)                # out tile
    flops = 2 * np_ * np_ * din + 2 * np_ * din * dout
    bytes_accessed = (np_ * np_ * a_p.dtype.itemsize + np_ * din * 4
                      + din * dout * 4 + np_ * dout * 4)

    kernel = functools.partial(_gin_layer1_kernel, n_valid=n_valid,
                               tile_m=tile_m)
    return pl.pallas_call(
        kernel,
        out_shape=jax.ShapeDtypeStruct((np_, dout), jnp.float32),
        grid=grid,
        in_specs=[
            pl.BlockSpec((tile_m, np_), lambda i: (i, 0)),   # A dst-row tile
            pl.BlockSpec((np_, din), lambda i: (0, 0)),      # X (all, resident)
            pl.BlockSpec((din, dout), lambda i: (0, 0)),     # W1
            pl.BlockSpec((1, dout), lambda i: (0, 0)),       # b1
        ],
        out_specs=pl.BlockSpec((tile_m, dout), lambda i: (i, 0)),
        compiler_params=pltpu.CompilerParams(
            dimension_semantics=("parallel",),               # shards across TCs
            vmem_limit_bytes=_vmem_limit(block_bytes)),
        cost_estimate=pl.CostEstimate(flops=flops, transcendentals=0,
                                      bytes_accessed=bytes_accessed),
    )(a_p, x_p, w_p, b_p)


def _gin_layer2_pool(a_p, h_p, w_p, b_p, p_p, *, tile_m):
    np_, cin = h_p.shape
    cout = w_p.shape[1]
    gp = p_p.shape[0]
    grid = (np_ // tile_m,)

    block_bytes = (tile_m * np_ * a_p.dtype.itemsize
                   + tile_m * np_ * 4                       # f32 copy of A tile
                   + np_ * cin * 4                          # h1 resident
                   + cin * cout * 4 + cout * 4              # W2, b2
                   + gp * tile_m * p_p.dtype.itemsize       # P column block
                   + gp * cout * 4)                         # pooled accumulator
    flops = 2 * np_ * np_ * cin + 2 * np_ * cin * cout + 2 * gp * np_ * cout
    bytes_accessed = (np_ * np_ * a_p.dtype.itemsize + np_ * cin * 4
                      + cin * cout * 4 + gp * np_ * p_p.dtype.itemsize
                      + gp * cout * 4)

    kernel = functools.partial(_gin_layer2_pool_kernel, tile_m=tile_m)
    return pl.pallas_call(
        kernel,
        out_shape=jax.ShapeDtypeStruct((gp, cout), jnp.float32),
        grid=grid,
        in_specs=[
            pl.BlockSpec((tile_m, np_), lambda i: (i, 0)),   # A dst-row tile
            pl.BlockSpec((np_, cin), lambda i: (0, 0)),      # h1 (resident)
            pl.BlockSpec((cin, cout), lambda i: (0, 0)),     # W2
            pl.BlockSpec((1, cout), lambda i: (0, 0)),       # b2
            pl.BlockSpec((gp, tile_m), lambda i: (0, i)),    # P column block
        ],
        out_specs=pl.BlockSpec((gp, cout), lambda i: (0, 0)),  # resident accum
        compiler_params=pltpu.CompilerParams(
            dimension_semantics=("arbitrary",),              # reduction axis
            vmem_limit_bytes=_vmem_limit(block_bytes)),
        cost_estimate=pl.CostEstimate(flops=flops, transcendentals=0,
                                      bytes_accessed=bytes_accessed),
    )(a_p, h_p, w_p, b_p, p_p)


def gin_forward(adj, feats, pool_mat, w1, b1, w2, b2, *, force_tiled=False):
    """adj: [N, N] (dst, src); feats: [N, D]; pool_mat: [G, N];
    w1: [D, C], b1: [C], w2: [C, C], b2: [C]. Returns [G, C] float32."""
    N, D = feats.shape
    G = pool_mat.shape[0]
    C = w1.shape[1]

    # Lane-dense padding: Np -> multiple of 128 so A/P last dim (lanes and the
    # MXU contraction axis) is fully packed.  Zero padding is exact here.
    Np = _round_up(N, LANE)
    Gp = _round_up(G, SUB)
    Dp = _round_up(D, LANE)
    Cp = _round_up(C, LANE)

    # A and P are 0/1 -> bf16 storage is exact and halves their footprint.
    A_p = _pad2(adj.astype(jnp.float32), Np, Np).astype(jnp.bfloat16)
    P_p = _pad2(pool_mat.astype(jnp.float32), Gp, Np).astype(jnp.bfloat16)
    X_p = _pad2(feats.astype(jnp.float32), Np, Dp)
    W1_p = _pad2(w1.astype(jnp.float32), Dp, Cp)
    W2_p = _pad2(w2.astype(jnp.float32), Cp, Cp)
    b1_p = _pad2(b1.astype(jnp.float32).reshape(1, C), 1, Cp)
    b2_p = _pad2(b2.astype(jnp.float32).reshape(1, C), 1, Cp)

    # Estimated VMEM working set of the fully-fused kernel (inputs + f32 copy
    # of A + the h1/h2/z intermediates the compiler will materialize).
    fused_bytes = (Np * Np * 2 + Np * Np * 4 + Np * Dp * 4
                   + Dp * Cp * 4 + Cp * Cp * 4 + 2 * Cp * 4
                   + Gp * Np * 2 + 4 * Np * Cp * 4 + Gp * Cp * 4)

    if not force_tiled and fused_bytes <= _FUSED_VMEM_BUDGET:
        out = _gin_fused(A_p, X_p, W1_p, b1_p, W2_p, b2_p, P_p,
                         working_bytes=fused_bytes)
    else:
        # dst-row tile: 256 matches the v6e/v7x 256-wide MXU when it divides
        # Np, otherwise 128 (also the right size on v5e's 128-wide MXU).
        tile_m = 256 if Np % 256 == 0 else 128
        h1 = _gin_layer1(A_p, X_p, W1_p, b1_p, n_valid=N, tile_m=tile_m)
        out = _gin_layer2_pool(A_p, h1, W2_p, b2_p, P_p, tile_m=tile_m)
    return out[:G, :C]


# --------------------------------------------------------------------------- #
# Reference + test
# --------------------------------------------------------------------------- #
def _reference(adj, feats, pool_mat, w1, b1, w2, b2):
    hp = jax.lax.Precision.HIGHEST
    h = feats + jnp.dot(adj, feats, precision=hp)
    h = jax.nn.relu(jnp.dot(h, w1, precision=hp) + b1)
    h = jnp.dot(h + jnp.dot(adj, h, precision=hp), w2, precision=hp) + b2
    return jnp.dot(pool_mat, h, precision=hp)


def _make_case(key, n, d_in, n_classes, graph_sizes):
    g = len(graph_sizes)
    k_adj, k_x, k_w1, k_b1, k_w2, k_b2 = jax.random.split(key, 6)
    graph_ids = jnp.concatenate(
        [jnp.full((s,), gi, dtype=jnp.int32) for gi, s in enumerate(graph_sizes)])
    same_graph = (graph_ids[:, None] == graph_ids[None, :]).astype(jnp.float32)
    adj = jax.random.bernoulli(k_adj, 0.2, (n, n)).astype(jnp.float32) * same_graph
    feats = jax.random.normal(k_x, (n, d_in), dtype=jnp.float32)
    w1 = 0.5 * jax.random.normal(k_w1, (d_in, n_classes), dtype=jnp.float32)
    b1 = 0.1 * jax.random.normal(k_b1, (n_classes,), dtype=jnp.float32)
    w2 = 0.5 * jax.random.normal(k_w2, (n_classes, n_classes), dtype=jnp.float32)
    b2 = 0.1 * jax.random.normal(k_b2, (n_classes,), dtype=jnp.float32)
    pool_mat = (jnp.arange(g)[:, None] == graph_ids[None, :]).astype(jnp.float32)
    return adj, feats, pool_mat, w1, b1, w2, b2


if __name__ == "__main__":
    key = jax.random.PRNGKey(0)
    k1, k2 = jax.random.split(key)

    # Case 1: the original toy setup (2 graphs, 16 nodes, input_size=1,
    # classes=2) -> fully-fused single-kernel path.
    args1 = _make_case(k1, n=16, d_in=1, n_classes=2, graph_sizes=[7, 9])
    out1 = jax.block_until_ready(gin_forward(*args1))
    ref1 = _reference(*args1)
    assert out1.shape == (2, 2)
    assert jnp.allclose(out1, ref1, atol=1e-3, rtol=1e-3), (out1, ref1)

    # Case 2: larger batched graph (Np = 384).  Run both the fused path and
    # the tiled fallback (3 row tiles) so both code paths are exercised.
    args2 = _make_case(k2, n=300, d_in=5, n_classes=3, graph_sizes=[60, 80, 70, 90])
    ref2 = _reference(*args2)
    out2_fused = jax.block_until_ready(gin_forward(*args2))
    out2_tiled = jax.block_until_ready(gin_forward(*args2, force_tiled=True))
    assert out2_fused.shape == (4, 3) and out2_tiled.shape == (4, 3)
    assert jnp.allclose(out2_fused, ref2, atol=1e-3, rtol=1e-3), (out2_fused, ref2)
    assert jnp.allclose(out2_tiled, ref2, atol=1e-3, rtol=1e-3), (out2_tiled, ref2)

    print("KERNEL_OK")
</pallas_src>

<mosaic_0001>
module attributes {stable_mosaic.version = 11 : i64} {
  func.func @_gin_fused_kernel(%arg0: i32, %arg1: memref<128x128xbf16, #tpu.memory_space<vmem>>, %arg2: memref<128x128xf32, #tpu.memory_space<vmem>>, %arg3: memref<128x128xf32, #tpu.memory_space<vmem>>, %arg4: memref<1x128xf32, #tpu.memory_space<vmem>>, %arg5: memref<128x128xf32, #tpu.memory_space<vmem>>, %arg6: memref<1x128xf32, #tpu.memory_space<vmem>>, %arg7: memref<8x128xbf16, #tpu.memory_space<vmem>>, %arg8: memref<8x128xf32, #tpu.memory_space<vmem>>) attributes {dimension_semantics = [#tpu.dimension_semantics<arbitrary>], iteration_bounds = array<i64: 1>, scalar_prefetch = 0 : i64, scratch_operands = 0 : i64, tpu.core_type = #tpu.core_type<tc>, window_params = [{pipeline_mode = #tpu.pipeline_mode<synchronous>, transform_indices = @transform_0, window_bounds = array<i64: 128, 128>}, {pipeline_mode = #tpu.pipeline_mode<synchronous>, transform_indices = @transform_1, window_bounds = array<i64: 128, 128>}, {pipeline_mode = #tpu.pipeline_mode<synchronous>, transform_indices = @transform_2, window_bounds = array<i64: 128, 128>}, {pipeline_mode = #tpu.pipeline_mode<synchronous>, transform_indices = @transform_3, window_bounds = array<i64: 1, 128>}, {pipeline_mode = #tpu.pipeline_mode<synchronous>, transform_indices = @transform_4, window_bounds = array<i64: 128, 128>}, {pipeline_mode = #tpu.pipeline_mode<synchronous>, transform_indices = @transform_5, window_bounds = array<i64: 1, 128>}, {pipeline_mode = #tpu.pipeline_mode<synchronous>, transform_indices = @transform_6, window_bounds = array<i64: 8, 128>}, {pipeline_mode = #tpu.pipeline_mode<synchronous>, transform_indices = @transform_7, window_bounds = array<i64: 8, 128>}]} {
    %c0 = arith.constant 0 : index
    %c0_0 = arith.constant 0 : index
    %0 = vector.load %arg1[%c0, %c0_0] : memref<128x128xbf16, #tpu.memory_space<vmem>>, vector<128x128xbf16>
    %1 = arith.extf %0 : vector<128x128xbf16> to vector<128x128xf32>
    %c0_1 = arith.constant 0 : index
    %c0_2 = arith.constant 0 : index
    %2 = vector.load %arg2[%c0_1, %c0_2] : memref<128x128xf32, #tpu.memory_space<vmem>>, vector<128x128xf32>
    %cst = arith.constant dense<0.000000e+00> : vector<128x128xf32>
    %3 = tpu.matmul %1, %2, %cst {dimension_numbers = #tpu.dot_dimension_numbers<[1], [0], [0], [1], [0, 0, 1, 1], [], []>} : vector<128x128xf32>, vector<128x128xf32>, vector<128x128xf32> -> vector<128x128xf32>
    %4 = arith.addf %2, %3 : vector<128x128xf32>
    %c0_3 = arith.constant 0 : index
    %c0_4 = arith.constant 0 : index
    %5 = vector.load %arg3[%c0_3, %c0_4] : memref<128x128xf32, #tpu.memory_space<vmem>>, vector<128x128xf32>
    %cst_5 = arith.constant dense<0.000000e+00> : vector<128x128xf32>
    %6 = tpu.matmul %4, %5, %cst_5 {dimension_numbers = #tpu.dot_dimension_numbers<[1], [0], [0], [1], [0, 0, 1, 1], [], []>} : vector<128x128xf32>, vector<128x128xf32>, vector<128x128xf32> -> vector<128x128xf32>
    %c0_6 = arith.constant 0 : index
    %c0_7 = arith.constant 0 : index
    %7 = vector.load %arg4[%c0_6, %c0_7] : memref<1x128xf32, #tpu.memory_space<vmem>>, vector<1x128xf32>
    %8 = vector.broadcast %7 : vector<1x128xf32> to vector<128x128xf32>
    %9 = arith.addf %6, %8 : vector<128x128xf32>
    %cst_8 = arith.constant 0.000000e+00 : f32
    %10 = vector.broadcast %cst_8 : f32 to vector<128x128xf32>
    %11 = arith.maximumf %9, %10 : vector<128x128xf32>
    %cst_9 = arith.constant dense<0.000000e+00> : vector<128x128xf32>
    %12 = tpu.matmul %1, %11, %cst_9 {dimension_numbers = #tpu.dot_dimension_numbers<[1], [0], [0], [1], [0, 0, 1, 1], [], []>} : vector<128x128xf32>, vector<128x128xf32>, vector<128x128xf32> -> vector<128x128xf32>
    %13 = arith.addf %11, %12 : vector<128x128xf32>
    %c0_10 = arith.constant 0 : index
    %c0_11 = arith.constant 0 : index
    %14 = vector.load %arg5[%c0_10, %c0_11] : memref<128x128xf32, #tpu.memory_space<vmem>>, vector<128x128xf32>
    %cst_12 = arith.constant dense<0.000000e+00> : vector<128x128xf32>
    %15 = tpu.matmul %13, %14, %cst_12 {dimension_numbers = #tpu.dot_dimension_numbers<[1], [0], [0], [1], [0, 0, 1, 1], [], []>} : vector<128x128xf32>, vector<128x128xf32>, vector<128x128xf32> -> vector<128x128xf32>
    %c0_13 = arith.constant 0 : index
    %c0_14 = arith.constant 0 : index
    %16 = vector.load %arg6[%c0_13, %c0_14] : memref<1x128xf32, #tpu.memory_space<vmem>>, vector<1x128xf32>
    %17 = vector.broadcast %16 : vector<1x128xf32> to vector<128x128xf32>
    %18 = arith.addf %15, %17 : vector<128x128xf32>
    %c0_15 = arith.constant 0 : index
    %c0_16 = arith.constant 0 : index
    %19 = vector.load %arg7[%c0_15, %c0_16] : memref<8x128xbf16, #tpu.memory_space<vmem>>, vector<8x128xbf16>
    %20 = arith.extf %19 : vector<8x128xbf16> to vector<8x128xf32>
    %cst_17 = arith.constant dense<0.000000e+00> : vector<8x128xf32>
    %21 = tpu.matmul %20, %18, %cst_17 {dimension_numbers = #tpu.dot_dimension_numbers<[1], [0], [0], [1], [0, 0, 1, 1], [], []>} : vector<8x128xf32>, vector<128x128xf32>, vector<8x128xf32> -> vector<8x128xf32>
    %c0_18 = arith.constant 0 : index
    %c0_19 = arith.constant 0 : index
    %22 = vector.load %arg8[%c0_18, %c0_19] : memref<8x128xf32, #tpu.memory_space<vmem>>, vector<8x128xf32>
    tpu.vector_store %arg8[%c0_18, %c0_19], %21 {strides = array<i32>} : memref<8x128xf32, #tpu.memory_space<vmem>>, vector<8x128xf32>,
    return
  }
  func.func @transform_0(%arg0: i32) -> (i32, i32) {
    %c0_i32 = arith.constant 0 : i32
    %c0_i32_0 = arith.constant 0 : i32
    %c0_i32_1 = arith.constant 0 : i32
    return %c0_i32, %c0_i32_0 : i32, i32
  }
  func.func @transform_1(%arg0: i32) -> (i32, i32) {
    %c0_i32 = arith.constant 0 : i32
    %c0_i32_0 = arith.constant 0 : i32
    %c0_i32_1 = arith.constant 0 : i32
    return %c0_i32, %c0_i32_0 : i32, i32
  }
  func.func @transform_2(%arg0: i32) -> (i32, i32) {
    %c0_i32 = arith.constant 0 : i32
    %c0_i32_0 = arith.constant 0 : i32
    %c0_i32_1 = arith.constant 0 : i32
    return %c0_i32, %c0_i32_0 : i32, i32
  }
  func.func @transform_3(%arg0: i32) -> (i32, i32) {
    %c0_i32 = arith.constant 0 : i32
    %c0_i32_0 = arith.constant 0 : i32
    %c0_i32_1 = arith.constant 0 : i32
    return %c0_i32, %c0_i32_0 : i32, i32
  }
  func.func @transform_4(%arg0: i32) -> (i32, i32) {
    %c0_i32 = arith.constant 0 : i32
    %c0_i32_0 = arith.constant 0 : i32
    %c0_i32_1 = arith.constant 0 : i32
    return %c0_i32, %c0_i32_0 : i32, i32
  }
  func.func @transform_5(%arg0: i32) -> (i32, i32) {
    %c0_i32 = arith.constant 0 : i32
    %c0_i32_0 = arith.constant 0 : i32
    %c0_i32_1 = arith.constant 0 : i32
    return %c0_i32, %c0_i32_0 : i32, i32
  }
  func.func @transform_6(%arg0: i32) -> (i32, i32) {
    %c0_i32 = arith.constant 0 : i32
    %c0_i32_0 = arith.constant 0 : i32
    %c0_i32_1 = arith.constant 0 : i32
    return %c0_i32, %c0_i32_0 : i32, i32
  }
  func.func @transform_7(%arg0: i32) -> (i32, i32) {
    %c0_i32 = arith.constant 0 : i32
    %c0_i32_0 = arith.constant 0 : i32
    %c0_i32_1 = arith.constant 0 : i32
    return %c0_i32, %c0_i32_0 : i32, i32
  }
}

</mosaic_0001>

<llo_original>
// kernel: tpu_custom_call.1
$region0: #{tpu_custom_call.1}
  #allocation0 [shape = 'u32[]', space=smem, size = 0x4, offset = 0x4, fixed_abs, tag = 'smem constant byte address 0x4 - core index']
  #allocation1 [shape = 'u32[144,128]{1,0:T(1,128)}', space=vmem, size = 0x12000, scoped, tag = 'internal scratch']
  %s0 = inlined_call_operand.hbm [shape: bf16[128,128], index: 0, kind: input, shape index: {}]
  %s1 = inlined_call_operand.hbm [shape: f32[128,128], index: 1, kind: input, shape index: {}]
  %s2 = inlined_call_operand.hbm [shape: f32[128,128], index: 2, kind: input, shape index: {}]
  %s3 = inlined_call_operand.vmem [shape: f32[1,128], index: 3, kind: input, shape index: {}]
  %s4 = inlined_call_operand.hbm [shape: f32[128,128], index: 4, kind: input, shape index: {}]
  %s5 = inlined_call_operand.vmem [shape: f32[1,128], index: 5, kind: input, shape index: {}]
  %s6 = inlined_call_operand.vmem [shape: bf16[8,128], index: 6, kind: input, shape index: {}]
  %s7 = inlined_call_operand.hbm [shape: f32[8,128], index: 7, kind: output, shape index: {}]
  %s8 = sld [smem:[#allocation0]]
  $region54: #{tpu_custom_call.1} parent=0
    _
  %s10 = ssub.s32 1, %s8
  %s11 = scalar_select 0, %s10, %s8
  $region1: #{tpu_custom_call.1} parent=0
    #allocation2 [shape = 'u8[32768]{0}', space=vmem, size = 0x8000, scoped, tag = 'input window, operand 0, single buffered']
    #allocation3 [shape = 's32[1]{0}', space=sflag, size = 0x4, scoped, tag = 'scoped memory for tpu_custom_call.1']
    #allocation4 [shape = 's32[1]{0}', space=sflag, size = 0x4, scoped, tag = 'scoped memory for tpu_custom_call.1']
    #allocation5 [shape = 'u8[65536]{0}', space=vmem, size = 0x10000, scoped, tag = 'input window, operand 1, single buffered']
    #allocation6 [shape = 's32[1]{0}', space=sflag, size = 0x4, scoped, tag = 'scoped memory for tpu_custom_call.1']
    #allocation7 [shape = 'u8[65536]{0}', space=vmem, size = 0x10000, scoped, tag = 'input window, operand 2, single buffered']
    #allocation8 [shape = 'u8[65536]{0}', space=vmem, size = 0x10000, scoped, tag = 'input window, operand 4, single buffered']
    #allocation9 [shape = 's32[1]{0}', space=sflag, size = 0x4, scoped, tag = 'scoped memory for tpu_custom_call.1']
    #allocation10 [shape = 'u8[4096]{0}', space=vmem, size = 0x1000, scoped, tag = 'output window, operand 0, single buffered']
    %12 = vsyncpa [#allocation3], 0
    %13 = vsyncpa [#allocation6], 0
    %14 = vsyncpa [#allocation9], 0
    %15 = vsyncpa [#allocation4], 0
    // Predicated region
    $region2: #{tpu_custom_call.1} parent=1 // pred_check
      _
    $region3: #{tpu_custom_call.1} parent=1 // pred_check_branch
      %17 = sbr.rel (0) target = $region5
    $region4: #{tpu_custom_call.1} parent=1 // pred_region
      %s19 = ssub.s32 1024, 1024
      %20 = vsyncadd [#allocation3], %s19
      %s21 = sshll.u32 [#allocation2], 4
      %s22 = int_to_ptr.vmem [resolvable:$true] %s21
      %27 = dma.hbm_to_vmem [thread:$0]  %s0, 1024, %s22, [#allocation3], 64, 64, 4
    $region5: #{tpu_custom_call.1} parent=1 // pred_fallthru
      _
    // Predicated region
    $region6: #{tpu_custom_call.1} parent=1 // pred_check
      _
    $region7: #{tpu_custom_call.1} parent=1 // pred_check_branch
      %29 = sbr.rel (0) target = $region9
    $region8: #{tpu_custom_call.1} parent=1 // pred_region
      %s31 = ssub.s32 2048, 2048
      %32 = vsyncadd [#allocation6], %s31
      %s33 = sshll.u32 [#allocation5], 4
      %s34 = int_to_ptr.vmem [resolvable:$true] %s33
      %39 = dma.hbm_to_vmem [thread:$0]  %s1, 2048, %s34, [#allocation6], 128, 128, 8
    $region9: #{tpu_custom_call.1} parent=1 // pred_fallthru
      _
    // Predicated region
    $region10: #{tpu_custom_call.1} parent=1 // pred_check
      _
    $region11: #{tpu_custom_call.1} parent=1 // pred_check_branch
      %41 = sbr.rel (0) target = $region13
    $region12: #{tpu_custom_call.1} parent=1 // pred_region
      %s43 = ssub.s32 2048, 2048
      %44 = vsyncadd [#allocation6], %s43
      %s45 = sshll.u32 [#allocation7], 4
      %s46 = int_to_ptr.vmem [resolvable:$true] %s45
      %51 = dma.hbm_to_vmem [thread:$0]  %s2, 2048, %s46, [#allocation6], 128, 128, 8
    $region13: #{tpu_custom_call.1} parent=1 // pred_fallthru
      _
    // Predicated region
    $region14: #{tpu_custom_call.1} parent=1 // pred_check
      _
    $region15: #{tpu_custom_call.1} parent=1 // pred_check_branch
      %53 = sbr.rel (0) target = $region17
    $region16: #{tpu_custom_call.1} parent=1 // pred_region
      _
    $region17: #{tpu_custom_call.1} parent=1 // pred_fallthru
      _
    // Predicated region
    $region18: #{tpu_custom_call.1} parent=1 // pred_check
      _
    $region19: #{tpu_custom_call.1} parent=1 // pred_check_branch
      %55 = sbr.rel (0) target = $region21
    $region20: #{tpu_custom_call.1} parent=1 // pred_region
      %s57 = ssub.s32 2048, 2048
      %58 = vsyncadd [#allocation9], %s57
      %s59 = sshll.u32 [#allocation8], 4
      %s60 = int_to_ptr.vmem [resolvable:$true] %s59
      %65 = dma.hbm_to_vmem [thread:$0]  %s4, 2048, %s60, [#allocation9], 128, 128, 8
    $region21: #{tpu_custom_call.1} parent=1 // pred_fallthru
      _
    // Predicated region
    $region22: #{tpu_custom_call.1} parent=1 // pred_check
      _
    $region23: #{tpu_custom_call.1} parent=1 // pred_check_branch
      %67 = sbr.rel (0) target = $region25
    $region24: #{tpu_custom_call.1} parent=1 // pred_region
      _
    $region25: #{tpu_custom_call.1} parent=1 // pred_fallthru
      _
    // Predicated region
    $region26: #{tpu_custom_call.1} parent=1 // pred_check
      _
    $region27: #{tpu_custom_call.1} parent=1 // pred_check_branch
      %69 = sbr.rel (0) target = $region29
    $region28: #{tpu_custom_call.1} parent=1 // pred_region
      _
    $region29: #{tpu_custom_call.1} parent=1 // pred_fallthru
      _
    // Predicated region
    $region30: #{tpu_custom_call.1} parent=1 // pred_check
      _
    $region31: #{tpu_custom_call.1} parent=1 // pred_check_branch
      %71 = sbr.rel (0) target = $region33
    $region32: #{tpu_custom_call.1} parent=1 // pred_region
      %72 = dma.done [#allocation3], 1024
    $region33: #{tpu_custom_call.1} parent=1 // pred_fallthru
      _
    // Predicated region
    $region34: #{tpu_custom_call.1} parent=1 // pred_check
      _
    $region35: #{tpu_custom_call.1} parent=1 // pred_check_branch
      %74 = sbr.rel (0) target = $region37
    $region36: #{tpu_custom_call.1} parent=1 // pred_region
      %75 = dma.done [#allocation6], 2048
    $region37: #{tpu_custom_call.1} parent=1 // pred_fallthru
      _
    // Predicated region
    $region38: #{tpu_custom_call.1} parent=1 // pred_check
      _
    $region39: #{tpu_custom_call.1} parent=1 // pred_check_branch
      %77 = sbr.rel (0) target = $region41
    $region40: #{tpu_custom_call.1} parent=1 // pred_region
      %78 = dma.done [#allocation6], 2048
    $region41: #{tpu_custom_call.1} parent=1 // pred_fallthru
      _
    // Predicated region
    $region42: #{tpu_custom_call.1} parent=1 // pred_check
      _
    $region43: #{tpu_custom_call.1} parent=1 // pred_check_branch
      %80 = sbr.rel (0) target = $region45
    $region44: #{tpu_custom_call.1} parent=1 // pred_region
      %81 = dma.done [#allocation9], 2048
    $region45: #{tpu_custom_call.1} parent=1 // pred_fallthru
      _
    %v82 = vld [vmem:[#allocation2] sm:$0xf]
    %v83 = vld [vmem:[#allocation2 + $0x4] sm:$0xf]
    %v84 = vld [vmem:[#allocation2 + $0x8] sm:$0xf]
    %v85 = vld [vmem:[#allocation2 + $0xc] sm:$0xf]
    %v86 = vld [vmem:[#allocation2 + $0x10] sm:$0xf]
    %v87 = vld [vmem:[#allocation2 + $0x14] sm:$0xf]
    %v88 = vld [vmem:[#allocation2 + $0x18] sm:$0xf]
    %v89 = vld [vmem:[#allocation2 + $0x1c] sm:$0xf]
    %v90 = vld [vmem:[#allocation2 + $0x20] sm:$0xf]
    %v91 = vld [vmem:[#allocation2 + $0x24] sm:$0xf]
    %v92 = vld [vmem:[#allocation2 + $0x28] sm:$0xf]
    %v93 = vld [vmem:[#allocation2 + $0x2c] sm:$0xf]
    %v94 = vld [vmem:[#allocation2 + $0x30] sm:$0xf]
    %v95 = vld [vmem:[#allocation2 + $0x34] sm:$0xf]
    %v96 = vld [vmem:[#allocation2 + $0x38] sm:$0xf]
    %v97 = vld [vmem:[#allocation2 + $0x3c] sm:$0xf]
    %v98 = vunpack.c.l.bf16 %v82
    %v99 = vunpack.c.l.bf16 %v83
    %v100 = vunpack.c.l.bf16 %v84
    %v101 = vunpack.c.l.bf16 %v85
    %v102 = vunpack.c.l.bf16 %v86
    %v103 = vunpack.c.l.bf16 %v87
    %v104 = vunpack.c.l.bf16 %v88
    %v105 = vunpack.c.l.bf16 %v89
    %v106 = vunpack.c.l.bf16 %v90
    %v107 = vunpack.c.l.bf16 %v91
    %v108 = vunpack.c.l.bf16 %v92
    %v109 = vunpack.c.l.bf16 %v93
    %v110 = vunpack.c.l.bf16 %v94
    %v111 = vunpack.c.l.bf16 %v95
    %v112 = vunpack.c.l.bf16 %v96
    %v113 = vunpack.c.l.bf16 %v97
    %v114 = vld [vmem:[#allocation5] sm:$0xff]
    %v115 = vld [vmem:[#allocation5 + $0x8] sm:$0xff]
    %v116 = vld [vmem:[#allocation5 + $0x10] sm:$0xff]
    %v117 = vld [vmem:[#allocation5 + $0x18] sm:$0xff]
    %v118 = vld [vmem:[#allocation5 + $0x20] sm:$0xff]
    %v119 = vld [vmem:[#allocation5 + $0x28] sm:$0xff]
    %v120 = vld [vmem:[#allocation5 + $0x30] sm:$0xff]
    %v121 = vld [vmem:[#allocation5 + $0x38] sm:$0xff]
    %v122 = vld [vmem:[#allocation5 + $0x40] sm:$0xff]
    %v123 = vld [vmem:[#allocation5 + $0x48] sm:$0xff]
    %v124 = vld [vmem:[#allocation5 + $0x50] sm:$0xff]
    %v125 = vld [vmem:[#allocation5 + $0x58] sm:$0xff]
    %v126 = vld [vmem:[#allocation5 + $0x60] sm:$0xff]
    %v127 = vld [vmem:[#allocation5 + $0x68] sm:$0xff]
    %v128 = vld [vmem:[#allocation5 + $0x70] sm:$0xff]
    %v129 = vld [vmem:[#allocation5 + $0x78] sm:$0xff]
    %130 = vmatprep.subr.mxu0 0.0
    %131 = vmatpush1.msra.mxu0 %v114
    %132 = vmatprep.subr.mxu0 0.0
    %133 = vmatpush1.msra.mxu0 %v115
    %134 = vmatprep.subr.mxu0 0.0
    %135 = vmatpush1.msra.mxu0 %v116
    %136 = vmatprep.subr.mxu0 0.0
    %137 = vmatpush1.msra.mxu0 %v117
    %138 = vmatprep.subr.mxu0 0.0
    %139 = vmatpush1.msra.mxu0 %v118
    %140 = vmatprep.subr.mxu0 0.0
    %141 = vmatpush1.msra.mxu0 %v119
    %142 = vmatprep.subr.mxu0 0.0
    %143 = vmatpush1.msra.mxu0 %v120
    %144 = vmatprep.subr.mxu0 0.0
    %145 = vmatpush1.msra.mxu0 %v121
    %146 = vmatprep.subr.mxu0 0.0
    %147 = vmatpush1.msra.mxu0 %v122
    %148 = vmatprep.subr.mxu0 0.0
    %149 = vmatpush1.msra.mxu0 %v123
    %150 = vmatprep.subr.mxu0 0.0
    %151 = vmatpush1.msra.mxu0 %v124
    %152 = vmatprep.subr.mxu0 0.0
    %153 = vmatpush1.msra.mxu0 %v125
    %154 = vmatprep.subr.mxu0 0.0
    %155 = vmatpush1.msra.mxu0 %v126
    %156 = vmatprep.subr.mxu0 0.0
    %157 = vmatpush1.msra.mxu0 %v127
    %158 = vmatprep.subr.mxu0 0.0
    %159 = vmatpush1.msra.mxu0 %v128
    %160 = vmatprep.subr.mxu0 0.0
    %161 = vmatpush1.msra.mxu0 %v129
    %162 = vmatprep.subr.mxu0 0.0
    %163 = vmatpush1.msra.mxu0 0.0
    %164 = vmatprep.subr.mxu0 0.0
    %165 = vmatpush1.msra.mxu0 0.0
    %166 = vmatprep.subr.mxu0 0.0
    %167 = vmatpush1.msra.mxu0 0.0
    %168 = vmatprep.subr.mxu0 0.0
    %169 = vmatpush1.msra.mxu0 0.0
    %170 = vmatprep.subr.mxu0 0.0
    %171 = vmatpush1.msra.mxu0 0.0
    %172 = vmatprep.subr.mxu0 0.0
    %173 = vmatpush1.msra.mxu0 0.0
    %174 = vmatprep.subr.mxu0 0.0
    %175 = vmatpush1.msra.mxu0 0.0
    %176 = vmatprep.subr.mxu0 0.0
    %177 = vmatpush1.msra.mxu0 0.0
    %178 = vmatprep.subr.mxu0 0.0
    %179 = vmatpush1.msra.mxu0 0.0
    %180 = vmatprep.subr.mxu0 0.0
    %181 = vmatpush1.msra.mxu0 0.0
    %182 = vmatprep.subr.mxu0 0.0
    %183 = vmatpush1.msra.mxu0 0.0
    %184 = vmatprep.subr.mxu0 0.0
    %185 = vmatpush1.msra.mxu0 0.0
    %186 = vmatprep.subr.mxu0 0.0
    %187 = vmatpush1.msra.mxu0 0.0
    %188 = vmatprep.subr.mxu0 0.0
    %189 = vmatpush1.msra.mxu0 0.0
    %190 = vmatprep.subr.mxu0 0.0
    %191 = vmatpush1.msra.mxu0 0.0
    %192 = vmatprep.subr.mxu0 0.0
    %193 = vmatpush1.msra.mxu0 0.0
    %194 = vmatprep.mubr.f32.mxu0 0.0
    %195 = vmatmul.mubr.f32.gmra.mrb[0].mxu0 %v98
    %v196 = vpop.f32.mrb[0].mxu0
    %v197 = vadd.f32 0.0, %v196
    %v198 = vpop.f32.mrb[0].mxu0
    %199 = vmatprep.mubr.f32.mxu0 0.0
    %200 = vmatmul.mubr.f32.gmra.mrb[0].mxu0 %v99
    %v201 = vpop.f32.mrb[0].mxu0
    %v202 = vadd.f32 0.0, %v201
    %v203 = vpop.f32.mrb[0].mxu0
    %204 = vmatprep.mubr.f32.mxu0 0.0
    %205 = vmatmul.mubr.f32.gmra.mrb[0].mxu0 %v100
    %v206 = vpop.f32.mrb[0].mxu0
    %v207 = vadd.f32 0.0, %v206
    %v208 = vpop.f32.mrb[0].mxu0
    %209 = vmatprep.mubr.f32.mxu0 0.0
    %210 = vmatmul.mubr.f32.gmra.mrb[0].mxu0 %v101
    %v211 = vpop.f32.mrb[0].mxu0
    %v212 = vadd.f32 0.0, %v211
    %v213 = vpop.f32.mrb[0].mxu0
    %214 = vmatprep.mubr.f32.mxu0 0.0
    %215 = vmatmul.mubr.f32.gmra.mrb[0].mxu0 %v102
    %v216 = vpop.f32.mrb[0].mxu0
    %v217 = vadd.f32 0.0, %v216
    %v218 = vpop.f32.mrb[0].mxu0
    %219 = vmatprep.mubr.f32.mxu0 0.0
    %220 = vmatmul.mubr.f32.gmra.mrb[0].mxu0 %v103
    %v221 = vpop.f32.mrb[0].mxu0
    %v222 = vadd.f32 0.0, %v221
    %v223 = vpop.f32.mrb[0].mxu0
    %224 = vmatprep.mubr.f32.mxu0 0.0
    %225 = vmatmul.mubr.f32.gmra.mrb[0].mxu0 %v104
    %v226 = vpop.f32.mrb[0].mxu0
    %v227 = vadd.f32 0.0, %v226
    %v228 = vpop.f32.mrb[0].mxu0
    %229 = vmatprep.mubr.f32.mxu0 0.0
    %230 = vmatmul.mubr.f32.gmra.mrb[0].mxu0 %v105
    %v231 = vpop.f32.mrb[0].mxu0
    %v232 = vadd.f32 0.0, %v231
    %v233 = vpop.f32.mrb[0].mxu0
    %234 = vmatprep.mubr.f32.mxu0 0.0
    %235 = vmatmul.mubr.f32.gmra.mrb[0].mxu0 %v106
    %v236 = vpop.f32.mrb[0].mxu0
    %v237 = vadd.f32 0.0, %v236
    %v238 = vpop.f32.mrb[0].mxu0
    %239 = vmatprep.mubr.f32.mxu0 0.0
    %240 = vmatmul.mubr.f32.gmra.mrb[0].mxu0 %v107
    %v241 = vpop.f32.mrb[0].mxu0
    %v242 = vadd.f32 0.0, %v241
    %v243 = vpop.f32.mrb[0].mxu0
    %244 = vmatprep.mubr.f32.mxu0 0.0
    %245 = vmatmul.mubr.f32.gmra.mrb[0].mxu0 %v108
    %v246 = vpop.f32.mrb[0].mxu0
    %v247 = vadd.f32 0.0, %v246
    %v248 = vpop.f32.mrb[0].mxu0
    %249 = vmatprep.mubr.f32.mxu0 0.0
    %250 = vmatmul.mubr.f32.gmra.mrb[0].mxu0 %v109
    %v251 = vpop.f32.mrb[0].mxu0
    %v252 = vadd.f32 0.0, %v251
    %v253 = vpop.f32.mrb[0].mxu0
    %254 = vmatprep.mubr.f32.mxu0 0.0
    %255 = vmatmul.mubr.f32.gmra.mrb[0].mxu0 %v110
    %v256 = vpop.f32.mrb[0].mxu0
    %v257 = vadd.f32 0.0, %v256
    %v258 = vpop.f32.mrb[0].mxu0
    %259 = vmatprep.mubr.f32.mxu0 0.0
    %260 = vmatmul.mubr.f32.gmra.mrb[0].mxu0 %v111
    %v261 = vpop.f32.mrb[0].mxu0
    %v262 = vadd.f32 0.0, %v261
    %v263 = vpop.f32.mrb[0].mxu0
    %264 = vmatprep.mubr.f32.mxu0 0.0
    %265 = vmatmul.mubr.f32.gmra.mrb[0].mxu0 %v112
    %v266 = vpop.f32.mrb[0].mxu0
    %v267 = vadd.f32 0.0, %v266
    %v268 = vpop.f32.mrb[0].mxu0
    %269 = vmatprep.mubr.f32.mxu0 0.0
    %270 = vmatmul.mubr.f32.gmra.mrb[0].mxu0 %v113
    %v271 = vpop.f32.mrb[0].mxu0
    %v272 = vadd.f32 0.0, %v271
    %v273 = vpop.f32.mrb[0].mxu0
    %274 = vdwg.mxu0
    %v275 = vadd.f32 %v114, %v197
    %v276 = vadd.f32 %v115, %v202
    %v277 = vadd.f32 %v116, %v207
    %v278 = vadd.f32 %v117, %v212
    %v279 = vadd.f32 %v118, %v217
    %v280 = vadd.f32 %v119, %v222
    %v281 = vadd.f32 %v120, %v227
    %v282 = vadd.f32 %v121, %v232
    %v283 = vadd.f32 %v122, %v237
    %v284 = vadd.f32 %v123, %v242
    %v285 = vadd.f32 %v124, %v247
    %v286 = vadd.f32 %v125, %v252
    %v287 = vadd.f32 %v126, %v257
    %v288 = vadd.f32 %v127, %v262
    %v289 = vadd.f32 %v128, %v267
    %v290 = vadd.f32 %v129, %v272
    %v291 = vld [vmem:[#allocation7] sm:$0xff]
    %v292 = vld [vmem:[#allocation7 + $0x8] sm:$0xff]
    %v293 = vld [vmem:[#allocation7 + $0x10] sm:$0xff]
    %v294 = vld [vmem:[#allocation7 + $0x18] sm:$0xff]
    %v295 = vld [vmem:[#allocation7 + $0x20] sm:$0xff]
    %v296 = vld [vmem:[#allocation7 + $0x28] sm:$0xff]
    %v297 = vld [vmem:[#allocation7 + $0x30] sm:$0xff]
    %v298 = vld [vmem:[#allocation7 + $0x38] sm:$0xff]
    %v299 = vld [vmem:[#allocation7 + $0x40] sm:$0xff]
    %v300 = vld [vmem:[#allocation7 + $0x48] sm:$0xff]
    %v301 = vld [vmem:[#allocation7 + $0x50] sm:$0xff]
    %v302 = vld [vmem:[#allocation7 + $0x58] sm:$0xff]
    %v303 = vld [vmem:[#allocation7 + $0x60] sm:$0xff]
    %v304 = vld [vmem:[#allocation7 + $0x68] sm:$0xff]
    %v305 = vld [vmem:[#allocation7 + $0x70] sm:$0xff]
    %v306 = vld [vmem:[#allocation7 + $0x78] sm:$0xff]
    %v307 = vld [vmem:[%s3] sm:$0x1]
    %v309 = vlaneseq
    %v310 = vshrl.u32 %v309, 7
    %v311 = vsub.s32 0, %v310
    %v312 = vrot.slane %v307, %v311
    %314 = vmatprep.subr.mxu0 0.0
    %315 = vmatpush1.msra.mxu0 %v291
    %316 = vmatprep.subr.mxu0 0.0
    %317 = vmatpush1.msra.mxu0 %v292
    %318 = vmatprep.subr.mxu0 0.0
    %319 = vmatpush1.msra.mxu0 %v293
    %320 = vmatprep.subr.mxu0 0.0
    %321 = vmatpush1.msra.mxu0 %v294
    %322 = vmatprep.subr.mxu0 0.0
    %323 = vmatpush1.msra.mxu0 %v295
    %324 = vmatprep.subr.mxu0 0.0
    %325 = vmatpush1.msra.mxu0 %v296
    %326 = vmatprep.subr.mxu0 0.0
    %327 = vmatpush1.msra.mxu0 %v297
    %328 = vmatprep.subr.mxu0 0.0
    %329 = vmatpush1.msra.mxu0 %v298
    %330 = vmatprep.subr.mxu0 0.0
    %331 = vmatpush1.msra.mxu0 %v299
    %332 = vmatprep.subr.mxu0 0.0
    %333 = vmatpush1.msra.mxu0 %v300
    %334 = vmatprep.subr.mxu0 0.0
    %335 = vmatpush1.msra.mxu0 %v301
    %336 = vmatprep.subr.mxu0 0.0
    %337 = vmatpush1.msra.mxu0 %v302
    %338 = vmatprep.subr.mxu0 0.0
    %339 = vmatpush1.msra.mxu0 %v303
    %340 = vmatprep.subr.mxu0 0.0
    %341 = vmatpush1.msra.mxu0 %v304
    %342 = vmatprep.subr.mxu0 0.0
    %343 = vmatpush1.msra.mxu0 %v305
    %344 = vmatprep.subr.mxu0 0.0
    %345 = vmatpush1.msra.mxu0 %v306
    %346 = vmatprep.subr.mxu0 0.0
    %347 = vmatpush1.msra.mxu0 0.0
    %348 = vmatprep.subr.mxu0 0.0
    %349 = vmatpush1.msra.mxu0 0.0
    %350 = vmatprep.subr.mxu0 0.0
    %351 = vmatpush1.msra.mxu0 0.0
    %352 = vmatprep.subr.mxu0 0.0
    %353 = vmatpush1.msra.mxu0 0.0
    %354 = vmatprep.subr.mxu0 0.0
    %355 = vmatpush1.msra.mxu0 0.0
    %356 = vmatprep.subr.mxu0 0.0
    %357 = vmatpush1.msra.mxu0 0.0
    %358 = vmatprep.subr.mxu0 0.0
    %359 = vmatpush1.msra.mxu0 0.0
    %360 = vmatprep.subr.mxu0 0.0
    %361 = vmatpush1.msra.mxu0 0.0
    %362 = vmatprep.subr.mxu0 0.0
    %363 = vmatpush1.msra.mxu0 0.0
    %364 = vmatprep.subr.mxu0 0.0
    %365 = vmatpush1.msra.mxu0 0.0
    %366 = vmatprep.subr.mxu0 0.0
    %367 = vmatpush1.msra.mxu0 0.0
    %368 = vmatprep.subr.mxu0 0.0
    %369 = vmatpush1.msra.mxu0 0.0
    %370 = vmatprep.subr.mxu0 0.0
    %371 = vmatpush1.msra.mxu0 0.0
    %372 = vmatprep.subr.mxu0 0.0
    %373 = vmatpush1.msra.mxu0 0.0
    %374 = vmatprep.subr.mxu0 0.0
    %375 = vmatpush1.msra.mxu0 0.0
    %376 = vmatprep.subr.mxu0 0.0
    %377 = vmatpush1.msra.mxu0 0.0
    %378 = vmatprep.mubr.f32.mxu0 0.0
    %379 = vmatmul.mubr.f32.gmra.mrb[0].mxu0 %v275
    %v380 = vpop.f32.mrb[0].mxu0
    %v381 = vadd.f32 %v312, %v380
    %v382 = vpop.f32.mrb[0].mxu0
    %383 = vmatprep.mubr.f32.mxu0 0.0
    %384 = vmatmul.mubr.f32.gmra.mrb[0].mxu0 %v276
    %v385 = vpop.f32.mrb[0].mxu0
    %v386 = vadd.f32 %v312, %v385
    %v387 = vpop.f32.mrb[0].mxu0
    %388 = vmatprep.mubr.f32.mxu0 0.0
    %389 = vmatmul.mubr.f32.gmra.mrb[0].mxu0 %v277
    %v390 = vpop.f32.mrb[0].mxu0
    %v391 = vadd.f32 %v312, %v390
    %v392 = vpop.f32.mrb[0].mxu0
    %393 = vmatprep.mubr.f32.mxu0 0.0
    %394 = vmatmul.mubr.f32.gmra.mrb[0].mxu0 %v278
    %v395 = vpop.f32.mrb[0].mxu0
    %v396 = vadd.f32 %v312, %v395
    %v397 = vpop.f32.mrb[0].mxu0
    %398 = vmatprep.mubr.f32.mxu0 0.0
    %399 = vmatmul.mubr.f32.gmra.mrb[0].mxu0 %v279
    %v400 = vpop.f32.mrb[0].mxu0
    %v401 = vadd.f32 %v312, %v400
    %v402 = vpop.f32.mrb[0].mxu0
    %403 = vmatprep.mubr.f32.mxu0 0.0
    %404 = vmatmul.mubr.f32.gmra.mrb[0].mxu0 %v280
    %v405 = vpop.f32.mrb[0].mxu0
    %v406 = vadd.f32 %v312, %v405
    %v407 = vpop.f32.mrb[0].mxu0
    %408 = vmatprep.mubr.f32.mxu0 0.0
    %409 = vmatmul.mubr.f32.gmra.mrb[0].mxu0 %v281
    %v410 = vpop.f32.mrb[0].mxu0
    %v411 = vadd.f32 %v312, %v410
    %v412 = vpop.f32.mrb[0].mxu0
    %413 = vmatprep.mubr.f32.mxu0 0.0
    %414 = vmatmul.mubr.f32.gmra.mrb[0].mxu0 %v282
    %v415 = vpop.f32.mrb[0].mxu0
    %v416 = vadd.f32 %v312, %v415
    %v417 = vpop.f32.mrb[0].mxu0
    %418 = vmatprep.mubr.f32.mxu0 0.0
    %419 = vmatmul.mubr.f32.gmra.mrb[0].mxu0 %v283
    %v420 = vpop.f32.mrb[0].mxu0
    %v421 = vadd.f32 %v312, %v420
    %v422 = vpop.f32.mrb[0].mxu0
    %423 = vmatprep.mubr.f32.mxu0 0.0
    %424 = vmatmul.mubr.f32.gmra.mrb[0].mxu0 %v284
    %v425 = vpop.f32.mrb[0].mxu0
    %v426 = vadd.f32 %v312, %v425
    %v427 = vpop.f32.mrb[0].mxu0
    %428 = vmatprep.mubr.f32.mxu0 0.0
    %429 = vmatmul.mubr.f32.gmra.mrb[0].mxu0 %v285
    %v430 = vpop.f32.mrb[0].mxu0
    %v431 = vadd.f32 %v312, %v430
    %v432 = vpop.f32.mrb[0].mxu0
    %433 = vmatprep.mubr.f32.mxu0 0.0
    %434 = vmatmul.mubr.f32.gmra.mrb[0].mxu0 %v286
    %v435 = vpop.f32.mrb[0].mxu0
    %v436 = vadd.f32 %v312, %v435
    %v437 = vpop.f32.mrb[0].mxu0
    %438 = vmatprep.mubr.f32.mxu0 0.0
    %439 = vmatmul.mubr.f32.gmra.mrb[0].mxu0 %v287
    %v440 = vpop.f32.mrb[0].mxu0
    %v441 = vadd.f32 %v312, %v440
    %v442 = vpop.f32.mrb[0].mxu0
    %443 = vmatprep.mubr.f32.mxu0 0.0
    %444 = vmatmul.mubr.f32.gmra.mrb[0].mxu0 %v288
    %v445 = vpop.f32.mrb[0].mxu0
    %v446 = vadd.f32 %v312, %v445
    %v447 = vpop.f32.mrb[0].mxu0
    %448 = vmatprep.mubr.f32.mxu0 0.0
    %449 = vmatmul.mubr.f32.gmra.mrb[0].mxu0 %v289
    %v450 = vpop.f32.mrb[0].mxu0
    %v451 = vadd.f32 %v312, %v450
    %v452 = vpop.f32.mrb[0].mxu0
    %453 = vmatprep.mubr.f32.mxu0 0.0
    %454 = vmatmul.mubr.f32.gmra.mrb[0].mxu0 %v290
    %v455 = vpop.f32.mrb[0].mxu0
    %v456 = vadd.f32 %v312, %v455
    %v457 = vpop.f32.mrb[0].mxu0
    %458 = vdwg.mxu0
    %v459 = vmax.f32 %v381, 0.0
    %v460 = vmax.f32 %v386, 0.0
    %v461 = vmax.f32 %v391, 0.0
    %v462 = vmax.f32 %v396, 0.0
    %v463 = vmax.f32 %v401, 0.0
    %v464 = vmax.f32 %v406, 0.0
    %v465 = vmax.f32 %v411, 0.0
    %v466 = vmax.f32 %v416, 0.0
    %v467 = vmax.f32 %v421, 0.0
    %v468 = vmax.f32 %v426, 0.0
    %v469 = vmax.f32 %v431, 0.0
    %v470 = vmax.f32 %v436, 0.0
    %v471 = vmax.f32 %v441, 0.0
    %v472 = vmax.f32 %v446, 0.0
    %v473 = vmax.f32 %v451, 0.0
    %v474 = vmax.f32 %v456, 0.0
    %475 = vmatprep.subr.mxu0 0.0
    %476 = vmatpush1.msra.mxu0 %v459
    %477 = vmatprep.subr.mxu0 0.0
    %478 = vmatpush1.msra.mxu0 %v460
    %479 = vmatprep.subr.mxu0 0.0
    %480 = vmatpush1.msra.mxu0 %v461
    %481 = vmatprep.subr.mxu0 0.0
    %482 = vmatpush1.msra.mxu0 %v462
    %483 = vmatprep.subr.mxu0 0.0
    %484 = vmatpush1.msra.mxu0 %v463
    %485 = vmatprep.subr.mxu0 0.0
    %486 = vmatpush1.msra.mxu0 %v464
    %487 = vmatprep.subr.mxu0 0.0
    %488 = vmatpush1.msra.mxu0 %v465
    %489 = vmatprep.subr.mxu0 0.0
    %490 = vmatpush1.msra.mxu0 %v466
    %491 = vmatprep.subr.mxu0 0.0
    %492 = vmatpush1.msra.mxu0 %v467
    %493 = vmatprep.subr.mxu0 0.0
    %494 = vmatpush1.msra.mxu0 %v468
    %495 = vmatprep.subr.mxu0 0.0
    %496 = vmatpush1.msra.mxu0 %v469
    %497 = vmatprep.subr.mxu0 0.0
    %498 = vmatpush1.msra.mxu0 %v470
    %499 = vmatprep.subr.mxu0 0.0
    %500 = vmatpush1.msra.mxu0 %v471
    %501 = vmatprep.subr.mxu0 0.0
    %502 = vmatpush1.msra.mxu0 %v472
    %503 = vmatprep.subr.mxu0 0.0
    %504 = vmatpush1.msra.mxu0 %v473
    %505 = vmatprep.subr.mxu0 0.0
    %506 = vmatpush1.msra.mxu0 %v474
    %507 = vmatprep.subr.mxu0 0.0
    %508 = vmatpush1.msra.mxu0 0.0
    %509 = vmatprep.subr.mxu0 0.0
    %510 = vmatpush1.msra.mxu0 0.0
    %511 = vmatprep.subr.mxu0 0.0
    %512 = vmatpush1.msra.mxu0 0.0
    %513 = vmatprep.subr.mxu0 0.0
    %514 = vmatpush1.msra.mxu0 0.0
    %515 = vmatprep.subr.mxu0 0.0
    %516 = vmatpush1.msra.mxu0 0.0
    %517 = vmatprep.subr.mxu0 0.0
    %518 = vmatpush1.msra.mxu0 0.0
    %519 = vmatprep.subr.mxu0 0.0
    %520 = vmatpush1.msra.mxu0 0.0
    %521 = vmatprep.subr.mxu0 0.0
    %522 = vmatpush1.msra.mxu0 0.0
    %523 = vmatprep.subr.mxu0 0.0
    %524 = vmatpush1.msra.mxu0 0.0
    %525 = vmatprep.subr.mxu0 0.0
    %526 = vmatpush1.msra.mxu0 0.0
    %527 = vmatprep.subr.mxu0 0.0
    %528 = vmatpush1.msra.mxu0 0.0
    %529 = vmatprep.subr.mxu0 0.0
    %530 = vmatpush1.msra.mxu0 0.0
    %531 = vmatprep.subr.mxu0 0.0
    %532 = vmatpush1.msra.mxu0 0.0
    %533 = vmatprep.subr.mxu0 0.0
    %534 = vmatpush1.msra.mxu0 0.0
    %535 = vmatprep.subr.mxu0 0.0
    %536 = vmatpush1.msra.mxu0 0.0
    %537 = vmatprep.subr.mxu0 0.0
    %538 = vmatpush1.msra.mxu0 0.0
    %539 = vmatprep.mubr.f32.mxu0 0.0
    %540 = vmatmul.mubr.f32.gmra.mrb[0].mxu0 %v98
    %v541 = vpop.f32.mrb[0].mxu0
    %v542 = vadd.f32 0.0, %v541
    %v543 = vpop.f32.mrb[0].mxu0
    %544 = vmatprep.mubr.f32.mxu0 0.0
    %545 = vmatmul.mubr.f32.gmra.mrb[0].mxu0 %v99
    %v546 = vpop.f32.mrb[0].mxu0
    %v547 = vadd.f32 0.0, %v546
    %v548 = vpop.f32.mrb[0].mxu0
    %549 = vmatprep.mubr.f32.mxu0 0.0
    %550 = vmatmul.mubr.f32.gmra.mrb[0].mxu0 %v100
    %v551 = vpop.f32.mrb[0].mxu0
    %v552 = vadd.f32 0.0, %v551
    %v553 = vpop.f32.mrb[0].mxu0
    %554 = vmatprep.mubr.f32.mxu0 0.0
    %555 = vmatmul.mubr.f32.gmra.mrb[0].mxu0 %v101
    %v556 = vpop.f32.mrb[0].mxu0
    %v557 = vadd.f32 0.0, %v556
    %v558 = vpop.f32.mrb[0].mxu0
    %559 = vmatprep.mubr.f32.mxu0 0.0
    %560 = vmatmul.mubr.f32.gmra.mrb[0].mxu0 %v102
    %v561 = vpop.f32.mrb[0].mxu0
    %v562 = vadd.f32 0.0, %v561
    %v563 = vpop.f32.mrb[0].mxu0
    %564 = vmatprep.mubr.f32.mxu0 0.0
    %565 = vmatmul.mubr.f32.gmra.mrb[0].mxu0 %v103
    %v566 = vpop.f32.mrb[0].mxu0
    %v567 = vadd.f32 0.0, %v566
    %v568 = vpop.f32.mrb[0].mxu0
    %569 = vmatprep.mubr.f32.mxu0 0.0
    %570 = vmatmul.mubr.f32.gmra.mrb[0].mxu0 %v104
    %v571 = vpop.f32.mrb[0].mxu0
    %v572 = vadd.f32 0.0, %v571
    %v573 = vpop.f32.mrb[0].mxu0
    %574 = vmatprep.mubr.f32.mxu0 0.0
    %575 = vmatmul.mubr.f32.gmra.mrb[0].mxu0 %v105
    %v576 = vpop.f32.mrb[0].mxu0
    %v577 = vadd.f32 0.0, %v576
    %v578 = vpop.f32.mrb[0].mxu0
    %579 = vmatprep.mubr.f32.mxu0 0.0
    %580 = vmatmul.mubr.f32.gmra.mrb[0].mxu0 %v106
    %v581 = vpop.f32.mrb[0].mxu0
    %v582 = vadd.f32 0.0, %v581
    %v583 = vpop.f32.mrb[0].mxu0
    %584 = vmatprep.mubr.f32.mxu0 0.0
    %585 = vmatmul.mubr.f32.gmra.mrb[0].mxu0 %v107
    %v586 = vpop.f32.mrb[0].mxu0
    %v587 = vadd.f32 0.0, %v586
    %v588 = vpop.f32.mrb[0].mxu0
    %589 = vmatprep.mubr.f32.mxu0 0.0
    %590 = vmatmul.mubr.f32.gmra.mrb[0].mxu0 %v108
    %v591 = vpop.f32.mrb[0].mxu0
    %v592 = vadd.f32 0.0, %v591
    %v593 = vpop.f32.mrb[0].mxu0
    %594 = vmatprep.mubr.f32.mxu0 0.0
    %595 = vmatmul.mubr.f32.gmra.mrb[0].mxu0 %v109
    %v596 = vpop.f32.mrb[0].mxu0
    %v597 = vadd.f32 0.0, %v596
    %v598 = vpop.f32.mrb[0].mxu0
    %599 = vmatprep.mubr.f32.mxu0 0.0
    %600 = vmatmul.mubr.f32.gmra.mrb[0].mxu0 %v110
    %v601 = vpop.f32.mrb[0].mxu0
    %v602 = vadd.f32 0.0, %v601
    %v603 = vpop.f32.mrb[0].mxu0
    %604 = vmatprep.mubr.f32.mxu0 0.0
    %605 = vmatmul.mubr.f32.gmra.mrb[0].mxu0 %v111
    %v606 = vpop.f32.mrb[0].mxu0
    %v607 = vadd.f32 0.0, %v606
    %v608 = vpop.f32.mrb[0].mxu0
    %609 = vmatprep.mubr.f32.mxu0 0.0
    %610 = vmatmul.mubr.f32.gmra.mrb[0].mxu0 %v112
    %v611 = vpop.f32.mrb[0].mxu0
    %v612 = vadd.f32 0.0, %v611
    %v613 = vpop.f32.mrb[0].mxu0
    %614 = vmatprep.mubr.f32.mxu0 0.0
    %615 = vmatmul.mubr.f32.gmra.mrb[0].mxu0 %v113
    %v616 = vpop.f32.mrb[0].mxu0
    %v617 = vadd.f32 0.0, %v616
    %v618 = vpop.f32.mrb[0].mxu0
    %619 = vdwg.mxu0
    %v620 = vadd.f32 %v459, %v542
    %v621 = vadd.f32 %v460, %v547
    %v622 = vadd.f32 %v461, %v552
    %v623 = vadd.f32 %v462, %v557
    %v624 = vadd.f32 %v463, %v562
    %v625 = vadd.f32 %v464, %v567
    %v626 = vadd.f32 %v465, %v572
    %v627 = vadd.f32 %v466, %v577
    %v628 = vadd.f32 %v467, %v582
    %v629 = vadd.f32 %v468, %v587
    %v630 = vadd.f32 %v469, %v592
    %v631 = vadd.f32 %v470, %v597
    %v632 = vadd.f32 %v471, %v602
    %v633 = vadd.f32 %v472, %v607
    %v634 = vadd.f32 %v473, %v612
    %v635 = vadd.f32 %v474, %v617
    %v636 = vld [vmem:[#allocation8] sm:$0xff]
    %v637 = vld [vmem:[#allocation8 + $0x8] sm:$0xff]
    %v638 = vld [vmem:[#allocation8 + $0x10] sm:$0xff]
    %v639 = vld [vmem:[#allocation8 + $0x18] sm:$0xff]
    %v640 = vld [vmem:[#allocation8 + $0x20] sm:$0xff]
    %v641 = vld [vmem:[#allocation8 + $0x28] sm:$0xff]
    %v642 = vld [vmem:[#allocation8 + $0x30] sm:$0xff]
    %v643 = vld [vmem:[#allocation8 + $0x38] sm:$0xff]
    %v644 = vld [vmem:[#allocation8 + $0x40] sm:$0xff]
    %v645 = vld [vmem:[#allocation8 + $0x48] sm:$0xff]
    %v646 = vld [vmem:[#allocation8 + $0x50] sm:$0xff]
    %v647 = vld [vmem:[#allocation8 + $0x58] sm:$0xff]
    %v648 = vld [vmem:[#allocation8 + $0x60] sm:$0xff]
    %v649 = vld [vmem:[#allocation8 + $0x68] sm:$0xff]
    %v650 = vld [vmem:[#allocation8 + $0x70] sm:$0xff]
    %v651 = vld [vmem:[#allocation8 + $0x78] sm:$0xff]
    %v652 = vld [vmem:[%s5] sm:$0x1]
    %v654 = vlaneseq
    %v655 = vshrl.u32 %v654, 7
    %v656 = vsub.s32 0, %v655
    %v657 = vrot.slane %v652, %v656
    %659 = vmatprep.subr.mxu0 0.0
    %660 = vmatpush1.msra.mxu0 %v636
    %661 = vmatprep.subr.mxu0 0.0
    %662 = vmatpush1.msra.mxu0 %v637
    %663 = vmatprep.subr.mxu0 0.0
    %664 = vmatpush1.msra.mxu0 %v638
    %665 = vmatprep.subr.mxu0 0.0
    %666 = vmatpush1.msra.mxu0 %v639
    %667 = vmatprep.subr.mxu0 0.0
    %668 = vmatpush1.msra.mxu0 %v640
    %669 = vmatprep.subr.mxu0 0.0
    %670 = vmatpush1.msra.mxu0 %v641
    %671 = vmatprep.subr.mxu0 0.0
    %672 = vmatpush1.msra.mxu0 %v642
    %673 = vmatprep.subr.mxu0 0.0
    %674 = vmatpush1.msra.mxu0 %v643
    %675 = vmatprep.subr.mxu0 0.0
    %676 = vmatpush1.msra.mxu0 %v644
    %677 = vmatprep.subr.mxu0 0.0
    %678 = vmatpush1.msra.mxu0 %v645
    %679 = vmatprep.subr.mxu0 0.0
    %680 = vmatpush1.msra.mxu0 %v646
    %681 = vmatprep.subr.mxu0 0.0
    %682 = vmatpush1.msra.mxu0 %v647
    %683 = vmatprep.subr.mxu0 0.0
    %684 = vmatpush1.msra.mxu0 %v648
    %685 = vmatprep.subr.mxu0 0.0
    %686 = vmatpush1.msra.mxu0 %v649
    %687 = vmatprep.subr.mxu0 0.0
    %688 = vmatpush1.msra.mxu0 %v650
    %689 = vmatprep.subr.mxu0 0.0
    %690 = vmatpush1.msra.mxu0 %v651
    %691 = vmatprep.subr.mxu0 0.0
    %692 = vmatpush1.msra.mxu0 0.0
    %693 = vmatprep.subr.mxu0 0.0
    %694 = vmatpush1.msra.mxu0 0.0
    %695 = vmatprep.subr.mxu0 0.0
    %696 = vmatpush1.msra.mxu0 0.0
    %697 = vmatprep.subr.mxu0 0.0
    %698 = vmatpush1.msra.mxu0 0.0
    %699 = vmatprep.subr.mxu0 0.0
    %700 = vmatpush1.msra.mxu0 0.0
    %701 = vmatprep.subr.mxu0 0.0
    %702 = vmatpush1.msra.mxu0 0.0
    %703 = vmatprep.subr.mxu0 0.0
    %704 = vmatpush1.msra.mxu0 0.0
    %705 = vmatprep.subr.mxu0 0.0
    %706 = vmatpush1.msra.mxu0 0.0
    %707 = vmatprep.subr.mxu0 0.0
    %708 = vmatpush1.msra.mxu0 0.0
    %709 = vmatprep.subr.mxu0 0.0
    %710 = vmatpush1.msra.mxu0 0.0
    %711 = vmatprep.subr.mxu0 0.0
    %712 = vmatpush1.msra.mxu0 0.0
    %713 = vmatprep.subr.mxu0 0.0
    %714 = vmatpush1.msra.mxu0 0.0
    %715 = vmatprep.subr.mxu0 0.0
    %716 = vmatpush1.msra.mxu0 0.0
    %717 = vmatprep.subr.mxu0 0.0
    %718 = vmatpush1.msra.mxu0 0.0
    %719 = vmatprep.subr.mxu0 0.0
    %720 = vmatpush1.msra.mxu0 0.0
    %721 = vmatprep.subr.mxu0 0.0
    %722 = vmatpush1.msra.mxu0 0.0
    %723 = vmatprep.mubr.f32.mxu0 0.0
    %724 = vmatmul.mubr.f32.gmra.mrb[0].mxu0 %v620
    %v725 = vpop.f32.mrb[0].mxu0
    %v726 = vadd.f32 %v657, %v725
    %v727 = vpop.f32.mrb[0].mxu0
    %728 = vmatprep.mubr.f32.mxu0 0.0
    %729 = vmatmul.mubr.f32.gmra.mrb[0].mxu0 %v621
    %v730 = vpop.f32.mrb[0].mxu0
    %v731 = vadd.f32 %v657, %v730
    %v732 = vpop.f32.mrb[0].mxu0
    %733 = vmatprep.mubr.f32.mxu0 0.0
    %734 = vmatmul.mubr.f32.gmra.mrb[0].mxu0 %v622
    %v735 = vpop.f32.mrb[0].mxu0
    %v736 = vadd.f32 %v657, %v735
    %v737 = vpop.f32.mrb[0].mxu0
    %738 = vmatprep.mubr.f32.mxu0 0.0
    %739 = vmatmul.mubr.f32.gmra.mrb[0].mxu0 %v623
    %v740 = vpop.f32.mrb[0].mxu0
    %v741 = vadd.f32 %v657, %v740
    %v742 = vpop.f32.mrb[0].mxu0
    %743 = vmatprep.mubr.f32.mxu0 0.0
    %744 = vmatmul.mubr.f32.gmra.mrb[0].mxu0 %v624
    %v745 = vpop.f32.mrb[0].mxu0
    %v746 = vadd.f32 %v657, %v745
    %v747 = vpop.f32.mrb[0].mxu0
    %748 = vmatprep.mubr.f32.mxu0 0.0
    %749 = vmatmul.mubr.f32.gmra.mrb[0].mxu0 %v625
    %v750 = vpop.f32.mrb[0].mxu0
    %v751 = vadd.f32 %v657, %v750
    %v752 = vpop.f32.mrb[0].mxu0
    %753 = vmatprep.mubr.f32.mxu0 0.0
    %754 = vmatmul.mubr.f32.gmra.mrb[0].mxu0 %v626
    %v755 = vpop.f32.mrb[0].mxu0
    %v756 = vadd.f32 %v657, %v755
    %v757 = vpop.f32.mrb[0].mxu0
    %758 = vmatprep.mubr.f32.mxu0 0.0
    %759 = vmatmul.mubr.f32.gmra.mrb[0].mxu0 %v627
    %v760 = vpop.f32.mrb[0].mxu0
    %v761 = vadd.f32 %v657, %v760
    %v762 = vpop.f32.mrb[0].mxu0
    %763 = vmatprep.mubr.f32.mxu0 0.0
    %764 = vmatmul.mubr.f32.gmra.mrb[0].mxu0 %v628
    %v765 = vpop.f32.mrb[0].mxu0
    %v766 = vadd.f32 %v657, %v765
    %v767 = vpop.f32.mrb[0].mxu0
    %768 = vmatprep.mubr.f32.mxu0 0.0
    %769 = vmatmul.mubr.f32.gmra.mrb[0].mxu0 %v629
    %v770 = vpop.f32.mrb[0].mxu0
    %v771 = vadd.f32 %v657, %v770
    %v772 = vpop.f32.mrb[0].mxu0
    %773 = vmatprep.mubr.f32.mxu0 0.0
    %774 = vmatmul.mubr.f32.gmra.mrb[0].mxu0 %v630
    %v775 = vpop.f32.mrb[0].mxu0
    %v776 = vadd.f32 %v657, %v775
    %v777 = vpop.f32.mrb[0].mxu0
    %778 = vmatprep.mubr.f32.mxu0 0.0
    %779 = vmatmul.mubr.f32.gmra.mrb[0].mxu0 %v631
    %v780 = vpop.f32.mrb[0].mxu0
    %v781 = vadd.f32 %v657, %v780
    %v782 = vpop.f32.mrb[0].mxu0
    %783 = vmatprep.mubr.f32.mxu0 0.0
    %784 = vmatmul.mubr.f32.gmra.mrb[0].mxu0 %v632
    %v785 = vpop.f32.mrb[0].mxu0
    %v786 = vadd.f32 %v657, %v785
    %v787 = vpop.f32.mrb[0].mxu0
    %788 = vmatprep.mubr.f32.mxu0 0.0
    %789 = vmatmul.mubr.f32.gmra.mrb[0].mxu0 %v633
    %v790 = vpop.f32.mrb[0].mxu0
    %v791 = vadd.f32 %v657, %v790
    %v792 = vpop.f32.mrb[0].mxu0
    %793 = vmatprep.mubr.f32.mxu0 0.0
    %794 = vmatmul.mubr.f32.gmra.mrb[0].mxu0 %v634
    %v795 = vpop.f32.mrb[0].mxu0
    %v796 = vadd.f32 %v657, %v795
    %v797 = vpop.f32.mrb[0].mxu0
    %798 = vmatprep.mubr.f32.mxu0 0.0
    %799 = vmatmul.mubr.f32.gmra.mrb[0].mxu0 %v635
    %v800 = vpop.f32.mrb[0].mxu0
    %v801 = vadd.f32 %v657, %v800
    %v802 = vpop.f32.mrb[0].mxu0
    %803 = vdwg.mxu0
    %v804 = vld [vmem:[%s6] sm:$0xf]
    %v805 = vunpack.c.l.bf16 %v804
    %806 = vmatprep.subr.mxu0 0.0
    %807 = vmatpush1.msra.mxu0 %v726
    %808 = vmatprep.subr.mxu0 0.0
    %809 = vmatpush1.msra.mxu0 %v731
    %810 = vmatprep.subr.mxu0 0.0
    %811 = vmatpush1.msra.mxu0 %v736
    %812 = vmatprep.subr.mxu0 0.0
    %813 = vmatpush1.msra.mxu0 %v741
    %814 = vmatprep.subr.mxu0 0.0
    %815 = vmatpush1.msra.mxu0 %v746
    %816 = vmatprep.subr.mxu0 0.0
    %817 = vmatpush1.msra.mxu0 %v751
    %818 = vmatprep.subr.mxu0 0.0
    %819 = vmatpush1.msra.mxu0 %v756
    %820 = vmatprep.subr.mxu0 0.0
    %821 = vmatpush1.msra.mxu0 %v761
    %822 = vmatprep.subr.mxu0 0.0
    %823 = vmatpush1.msra.mxu0 %v766
    %824 = vmatprep.subr.mxu0 0.0
    %825 = vmatpush1.msra.mxu0 %v771
    %826 = vmatprep.subr.mxu0 0.0
    %827 = vmatpush1.msra.mxu0 %v776
    %828 = vmatprep.subr.mxu0 0.0
    %829 = vmatpush1.msra.mxu0 %v781
    %830 = vmatprep.subr.mxu0 0.0
    %831 = vmatpush1.msra.mxu0 %v786
    %832 = vmatprep.subr.mxu0 0.0
    %833 = vmatpush1.msra.mxu0 %v791
    %834 = vmatprep.subr.mxu0 0.0
    %835 = vmatpush1.msra.mxu0 %v796
    %836 = vmatprep.subr.mxu0 0.0
    %837 = vmatpush1.msra.mxu0 %v801
    %838 = vmatprep.subr.mxu0 0.0
    %839 = vmatpush1.msra.mxu0 0.0
    %840 = vmatprep.subr.mxu0 0.0
    %841 = vmatpush1.msra.mxu0 0.0
    %842 = vmatprep.subr.mxu0 0.0
    %843 = vmatpush1.msra.mxu0 0.0
    %844 = vmatprep.subr.mxu0 0.0
    %845 = vmatpush1.msra.mxu0 0.0
    %846 = vmatprep.subr.mxu0 0.0
    %847 = vmatpush1.msra.mxu0 0.0
    %848 = vmatprep.subr.mxu0 0.0
    %849 = vmatpush1.msra.mxu0 0.0
    %850 = vmatprep.subr.mxu0 0.0
    %851 = vmatpush1.msra.mxu0 0.0
    %852 = vmatprep.subr.mxu0 0.0
    %853 = vmatpush1.msra.mxu0 0.0
    %854 = vmatprep.subr.mxu0 0.0
    %855 = vmatpush1.msra.mxu0 0.0
    %856 = vmatprep.subr.mxu0 0.0
    %857 = vmatpush1.msra.mxu0 0.0
    %858 = vmatprep.subr.mxu0 0.0
    %859 = vmatpush1.msra.mxu0 0.0
    %860 = vmatprep.subr.mxu0 0.0
    %861 = vmatpush1.msra.mxu0 0.0
    %862 = vmatprep.subr.mxu0 0.0
    %863 = vmatpush1.msra.mxu0 0.0
    %864 = vmatprep.subr.mxu0 0.0
    %865 = vmatpush1.msra.mxu0 0.0
    %866 = vmatprep.subr.mxu0 0.0
    %867 = vmatpush1.msra.mxu0 0.0
    %868 = vmatprep.subr.mxu0 0.0
    %869 = vmatpush1.msra.mxu0 0.0
    %870 = vmatprep.mubr.f32.mxu0 0.0
    %871 = vmatmul.mubr.f32.gmra.mrb[0].mxu0 %v805
    %v872 = vpop.f32.mrb[0].mxu0
    %v873 = vadd.f32 0.0, %v872
    %v874 = vpop.f32.mrb[0].mxu0
    %875 = vdwg.mxu0
    %876 = vst [vmem:[#allocation10] sm:$0xff] %v873
    // Predicated region
    $region46: #{tpu_custom_call.1} parent=1 // pred_check
      _
    $region47: #{tpu_custom_call.1} parent=1 // pred_check_branch
      %878 = sbr.rel (0) target = $region49
    $region48: #{tpu_custom_call.1} parent=1 // pred_region
      %s880 = ssub.s32 128, 128
      %881 = vsyncadd [#allocation4], %s880
      %s883 = sshll.u32 [#allocation10], 4
      %s884 = int_to_ptr.vmem [resolvable:$true] %s883
      %886 = dma.vmem_to_hbm [thread:$0]  %s884, 128, %s7, [#allocation4]
    $region49: #{tpu_custom_call.1} parent=1 // pred_fallthru
      _
    // Predicated region
    $region50: #{tpu_custom_call.1} parent=1 // pred_check
      _
    $region51: #{tpu_custom_call.1} parent=1 // pred_check_branch
      %888 = sbr.rel (0) target = $region53
    $region52: #{tpu_custom_call.1} parent=1 // pred_region
      %889 = dma.done [#allocation4], 128
    $region53: #{tpu_custom_call.1} parent=1 // pred_fallthru
      _
    %890 = vsyncpa [#allocation3], 1
    %891 = vsyncpa [#allocation6], 1
    %892 = vsyncpa [#allocation9], 1
    %893 = vsyncpa [#allocation4], 1

</llo_original>
